<compile_context>
chip_gen: v7x
topology: tpu7x:2x2x1
jax: 0.10.0
libtpu: 0.0.40
codegen_flags: <defaults>
</compile_context>

<pallas_src>
import jax
import jax.numpy as jnp
from jax.experimental import pallas as pl
from jax.experimental.pallas import tpu as pltpu

# Layer widths of Distance2 in order of application in forward():
# layer1..layer4, layer9, layer10, layer5..layer8
DIMS = [2, 8, 16, 32, 64, 128, 64, 32, 16, 8, 2]
NUM_LAYERS = len(DIMS) - 1   # 10 linear layers
DIN = DIMS[0]                # 2
DOUT = DIMS[-1]              # 2
P = 128                      # padded feature width (lane dim / MXU tile)
TILE_B_MAX = 1024            # batch rows per grid step at large B (sweep 512/1024/2048)
TILE_B_MIN = 128             # only force a split if each tile keeps >= this many rows


def _cdiv(a, b):
    return -(-a // b)


def _round_up(n, m):
    return _cdiv(n, m) * m


def mlp_kernel(x_ref, w_ref, b_ref, o_ref):
    """All 10 Linear(+ReLU) layers fused; one batch tile per grid step.

    x_ref: (TILE_B, DIN)      f32 activations for this batch tile
    w_ref: (NUM_LAYERS, P, P) zero-padded bf16 weights, [in, out] layout (VMEM resident)
    b_ref: (NUM_LAYERS, 1, P) zero-padded f32 biases (VMEM resident)
    o_ref: (TILE_B, DOUT)     f32 outputs for this batch tile
    """
    x = x_ref[...]                                     # (TILE_B, 2) f32

    # Layer 1 (2 -> 128 padded) on the VPU in f32: avoids a tiny-K matmul and
    # an unaligned lane widen.  Only the two live weight rows are unpacked
    # bf16 -> f32, keeping all elementwise math f32 (friendly to v5e's VPU).
    w0 = w_ref[0]                                      # (P, P) bf16
    h = x[:, 0:1] * w0[0:1, :].astype(jnp.float32) + b_ref[0]
    for d in range(1, DIN):
        h = h + x[:, d:d + 1] * w0[d:d + 1, :].astype(jnp.float32)
    h = jnp.maximum(h, 0.0)                            # (TILE_B, P) f32

    # Layers 2..10: bf16 x bf16 -> f32 MXU matmuls (single MXU pass) against
    # the resident weight stack; bias add + ReLU stay in f32.
    # NOTE: per-layer K trimming (contracting over round_up(DIMS[i], 16)
    # instead of 128 zero rows) is a possible secondary win, deferred until
    # Mosaic's sub-128-K slicing behaviour is verified.
    for i in range(1, NUM_LAYERS):                     # static unroll
        h = jnp.dot(h.astype(jnp.bfloat16), w_ref[i],
                    preferred_element_type=jnp.float32) + b_ref[i]
        if i < NUM_LAYERS - 1:                         # ReLU on all but layer8
            h = jnp.maximum(h, 0.0)

    o_ref[...] = h[:, :DOUT]


def _choose_tile_b(batch):
    """Ragged-aware tile size: split the *real* batch evenly (<= 7 pad rows per
    tile) and keep >= 2 grid steps when there is enough work so v7x's two
    TensorCores both get a "parallel" step."""
    num_tiles = _cdiv(batch, TILE_B_MAX)
    if num_tiles == 1 and batch >= 2 * TILE_B_MIN:
        num_tiles = 2
    return _round_up(_cdiv(batch, num_tiles), 8)


@jax.jit
def distance2_forward(x, w_stack, b_stack):
    """x: (B, 2) f32 -> (B, 2) f32, matching Distance2.forward semantics."""
    B = x.shape[0]
    tile_b = _choose_tile_b(B)
    b_pad = _round_up(B, tile_b)
    if b_pad != B:
        x = jnp.pad(x, ((0, b_pad - B), (0, 0)))

    out = pl.pallas_call(
        mlp_kernel,
        out_shape=jax.ShapeDtypeStruct((b_pad, DOUT), jnp.float32),
        grid=(b_pad // tile_b,),
        in_specs=[
            pl.BlockSpec((tile_b, DIN), lambda i: (i, 0)),
            # Constant index maps -> weight/bias stacks stay VMEM resident
            # across all grid steps (no re-DMA).  bf16 weights are ~320 KiB
            # (640 KiB double-buffered): VMEM is a non-issue on every
            # generation, including v7x's 64 MiB.
            pl.BlockSpec((NUM_LAYERS, P, P), lambda i: (0, 0, 0)),
            pl.BlockSpec((NUM_LAYERS, 1, P), lambda i: (0, 0, 0)),
        ],
        out_specs=pl.BlockSpec((tile_b, DOUT), lambda i: (i, 0)),
        compiler_params=pltpu.CompilerParams(
            dimension_semantics=("parallel",)),
    )(x, w_stack, b_stack)
    return out[:B]


def pack_params(weights, biases):
    """Pre-pack layer params once (outside the hot path).

    Weights -> zero-padded bf16 (L, 128, 128) stack feeding the MXU;
    biases  -> f32 (L, 1, 128) so bias add / ReLU stay in f32.
    """
    w_stack = jnp.zeros((NUM_LAYERS, P, P), jnp.float32)
    b_stack = jnp.zeros((NUM_LAYERS, 1, P), jnp.float32)
    for i, (w, b) in enumerate(zip(weights, biases)):
        din, dout = w.shape
        w_stack = w_stack.at[i, :din, :dout].set(w)
        b_stack = b_stack.at[i, 0, :dout].set(b)
    return w_stack.astype(jnp.bfloat16), b_stack


def init_params(key):
    """Deterministic init mimicking nn.Linear default (U[-1/sqrt(fan_in), +])."""
    weights, biases = [], []
    for i in range(NUM_LAYERS):
        din, dout = DIMS[i], DIMS[i + 1]
        key, kw, kb = jax.random.split(key, 3)
        bound = 1.0 / (din ** 0.5)
        # Stored as [in, out] (transpose of PyTorch's [out, in]) for y = x @ W.
        w = jax.random.uniform(kw, (din, dout), jnp.float32, -bound, bound)
        b = jax.random.uniform(kb, (dout,), jnp.float32, -bound, bound)
        weights.append(w)
        biases.append(b)
    return weights, biases


def reference_forward_f32(x, weights, biases):
    """Pure f32 reference of Distance2.forward."""
    h = x
    for i in range(NUM_LAYERS):
        h = h @ weights[i] + biases[i]
        if i < NUM_LAYERS - 1:
            h = jnp.maximum(h, 0.0)
    return h


def reference_forward_matched(x, w_stack, b_stack):
    """Mirrors the kernel's numerics exactly: f32 VPU first layer with
    bf16-quantized weights, then bf16 x bf16 -> f32 matmuls."""
    w0 = w_stack[0].astype(jnp.float32)
    h = x[:, 0:1] * w0[0:1, :] + b_stack[0]
    for d in range(1, DIN):
        h = h + x[:, d:d + 1] * w0[d:d + 1, :]
    h = jnp.maximum(h, 0.0)
    for i in range(1, NUM_LAYERS):
        h = jnp.dot(h.astype(jnp.bfloat16), w_stack[i],
                    preferred_element_type=jnp.float32) + b_stack[i]
        if i < NUM_LAYERS - 1:
            h = jnp.maximum(h, 0.0)
    return h[:, :DOUT]


if __name__ == "__main__":
    key = jax.random.PRNGKey(0)
    kparams, kx1, kx2 = jax.random.split(key, 3)
    weights, biases = init_params(kparams)
    w_stack, b_stack = pack_params(weights, biases)   # packed once, outside jit

    # Small check (single tile).
    x_small = jax.random.normal(kx1, (8, 2), jnp.float32)
    out_small = jax.block_until_ready(distance2_forward(x_small, w_stack, b_stack))
    assert out_small.shape == (8, 2)
    ref_m = reference_forward_matched(x_small, w_stack, b_stack)
    ref_f = reference_forward_f32(x_small, weights, biases)
    assert jnp.allclose(out_small, ref_m, atol=1e-4, rtol=1e-4), "mismatch vs matched ref (small)"
    assert jnp.allclose(out_small, ref_f, atol=5e-2, rtol=5e-2), "mismatch vs f32 ref (small)"

    # Ragged multi-tile check: B=300 -> 2 grid steps of 152 rows (4 pad rows),
    # exercising the batch grid + ragged-tail padding + dual-TC path on v7x.
    x_big = jax.random.normal(kx2, (300, 2), jnp.float32)
    out_big = jax.block_until_ready(distance2_forward(x_big, w_stack, b_stack))
    assert out_big.shape == (300, 2)
    ref_mb = reference_forward_matched(x_big, w_stack, b_stack)
    ref_fb = reference_forward_f32(x_big, weights, biases)
    assert jnp.allclose(out_big, ref_mb, atol=1e-4, rtol=1e-4), "mismatch vs matched ref (big)"
    assert jnp.allclose(out_big, ref_fb, atol=5e-2, rtol=5e-2), "mismatch vs f32 ref (big)"

    print("KERNEL_OK")
</pallas_src>

<mosaic_0001>
module attributes {stable_mosaic.version = 11 : i64} {
  func.func @mlp_kernel(%arg0: i32, %arg1: memref<8x2xf32, #tpu.memory_space<vmem>>, %arg2: memref<10x128x128xbf16, #tpu.memory_space<vmem>>, %arg3: memref<10x1x128xf32, #tpu.memory_space<vmem>>, %arg4: memref<8x2xf32, #tpu.memory_space<vmem>>) attributes {dimension_semantics = [#tpu.dimension_semantics<parallel>], iteration_bounds = array<i64: 1>, scalar_prefetch = 0 : i64, scratch_operands = 0 : i64, tpu.core_type = #tpu.core_type<tc>, window_params = [{transform_indices = @transform_0, window_bounds = array<i64: 8, 2>}, {pipeline_mode = #tpu.pipeline_mode<synchronous>, transform_indices = @transform_1, window_bounds = array<i64: 10, 128, 128>}, {pipeline_mode = #tpu.pipeline_mode<synchronous>, transform_indices = @transform_2, window_bounds = array<i64: 10, 1, 128>}, {transform_indices = @transform_3, window_bounds = array<i64: 8, 2>}]} {
    %c0 = arith.constant 0 : index
    %c0_0 = arith.constant 0 : index
    %0 = vector.load %arg1[%c0, %c0_0] : memref<8x2xf32, #tpu.memory_space<vmem>>, vector<8x2xf32>
    %c0_1 = arith.constant 0 : index
    %c0_2 = arith.constant 0 : index
    %c0_3 = arith.constant 0 : index
    %1 = vector.load %arg2[%c0_1, %c0_2, %c0_3] : memref<10x128x128xbf16, #tpu.memory_space<vmem>>, vector<1x128x128xbf16>
    %2 = vector.shape_cast %1 : vector<1x128x128xbf16> to vector<128x128xbf16>
    %3 = vector.extract_strided_slice %0 {offsets = [0, 0], sizes = [8, 1], strides = [1, 1]} : vector<8x2xf32> to vector<8x1xf32>
    %4 = vector.extract_strided_slice %2 {offsets = [0, 0], sizes = [1, 128], strides = [1, 1]} : vector<128x128xbf16> to vector<1x128xbf16>
    %5 = arith.extf %4 : vector<1x128xbf16> to vector<1x128xf32>
    %6 = vector.broadcast %3 : vector<8x1xf32> to vector<8x128xf32>
    %7 = vector.broadcast %5 : vector<1x128xf32> to vector<8x128xf32>
    %8 = arith.mulf %6, %7 : vector<8x128xf32>
    %c0_4 = arith.constant 0 : index
    %c0_5 = arith.constant 0 : index
    %c0_6 = arith.constant 0 : index
    %9 = vector.load %arg3[%c0_4, %c0_5, %c0_6] : memref<10x1x128xf32, #tpu.memory_space<vmem>>, vector<1x1x128xf32>
    %10 = vector.shape_cast %9 : vector<1x1x128xf32> to vector<1x128xf32>
    %11 = vector.broadcast %10 : vector<1x128xf32> to vector<8x128xf32>
    %12 = arith.addf %8, %11 : vector<8x128xf32>
    %13 = vector.extract_strided_slice %0 {offsets = [0, 1], sizes = [8, 1], strides = [1, 1]} : vector<8x2xf32> to vector<8x1xf32>
    %14 = vector.extract_strided_slice %2 {offsets = [1, 0], sizes = [1, 128], strides = [1, 1]} : vector<128x128xbf16> to vector<1x128xbf16>
    %15 = arith.extf %14 : vector<1x128xbf16> to vector<1x128xf32>
    %16 = vector.broadcast %13 : vector<8x1xf32> to vector<8x128xf32>
    %17 = vector.broadcast %15 : vector<1x128xf32> to vector<8x128xf32>
    %18 = arith.mulf %16, %17 : vector<8x128xf32>
    %19 = arith.addf %12, %18 : vector<8x128xf32>
    %cst = arith.constant 0.000000e+00 : f32
    %20 = vector.broadcast %cst : f32 to vector<8x128xf32>
    %21 = arith.maximumf %19, %20 : vector<8x128xf32>
    %22 = arith.truncf %21 : vector<8x128xf32> to vector<8x128xbf16>
    %c1 = arith.constant 1 : index
    %c0_7 = arith.constant 0 : index
    %c0_8 = arith.constant 0 : index
    %23 = vector.load %arg2[%c1, %c0_7, %c0_8] : memref<10x128x128xbf16, #tpu.memory_space<vmem>>, vector<1x128x128xbf16>
    %24 = vector.shape_cast %23 : vector<1x128x128xbf16> to vector<128x128xbf16>
    %cst_9 = arith.constant dense<0.000000e+00> : vector<8x128xf32>
    %25 = tpu.matmul %22, %24, %cst_9 {dimension_numbers = #tpu.dot_dimension_numbers<[1], [0], [0], [1], [0, 0, 1, 1], [], []>} : vector<8x128xbf16>, vector<128x128xbf16>, vector<8x128xf32> -> vector<8x128xf32>
    %c1_10 = arith.constant 1 : index
    %c0_11 = arith.constant 0 : index
    %c0_12 = arith.constant 0 : index
    %26 = vector.load %arg3[%c1_10, %c0_11, %c0_12] : memref<10x1x128xf32, #tpu.memory_space<vmem>>, vector<1x1x128xf32>
    %27 = vector.shape_cast %26 : vector<1x1x128xf32> to vector<1x128xf32>
    %28 = vector.broadcast %27 : vector<1x128xf32> to vector<8x128xf32>
    %29 = arith.addf %25, %28 : vector<8x128xf32>
    %cst_13 = arith.constant 0.000000e+00 : f32
    %30 = vector.broadcast %cst_13 : f32 to vector<8x128xf32>
    %31 = arith.maximumf %29, %30 : vector<8x128xf32>
    %32 = arith.truncf %31 : vector<8x128xf32> to vector<8x128xbf16>
    %c2 = arith.constant 2 : index
    %c0_14 = arith.constant 0 : index
    %c0_15 = arith.constant 0 : index
    %33 = vector.load %arg2[%c2, %c0_14, %c0_15] : memref<10x128x128xbf16, #tpu.memory_space<vmem>>, vector<1x128x128xbf16>
    %34 = vector.shape_cast %33 : vector<1x128x128xbf16> to vector<128x128xbf16>
    %cst_16 = arith.constant dense<0.000000e+00> : vector<8x128xf32>
    %35 = tpu.matmul %32, %34, %cst_16 {dimension_numbers = #tpu.dot_dimension_numbers<[1], [0], [0], [1], [0, 0, 1, 1], [], []>} : vector<8x128xbf16>, vector<128x128xbf16>, vector<8x128xf32> -> vector<8x128xf32>
    %c2_17 = arith.constant 2 : index
    %c0_18 = arith.constant 0 : index
    %c0_19 = arith.constant 0 : index
    %36 = vector.load %arg3[%c2_17, %c0_18, %c0_19] : memref<10x1x128xf32, #tpu.memory_space<vmem>>, vector<1x1x128xf32>
    %37 = vector.shape_cast %36 : vector<1x1x128xf32> to vector<1x128xf32>
    %38 = vector.broadcast %37 : vector<1x128xf32> to vector<8x128xf32>
    %39 = arith.addf %35, %38 : vector<8x128xf32>
    %cst_20 = arith.constant 0.000000e+00 : f32
    %40 = vector.broadcast %cst_20 : f32 to vector<8x128xf32>
    %41 = arith.maximumf %39, %40 : vector<8x128xf32>
    %42 = arith.truncf %41 : vector<8x128xf32> to vector<8x128xbf16>
    %c3 = arith.constant 3 : index
    %c0_21 = arith.constant 0 : index
    %c0_22 = arith.constant 0 : index
    %43 = vector.load %arg2[%c3, %c0_21, %c0_22] : memref<10x128x128xbf16, #tpu.memory_space<vmem>>, vector<1x128x128xbf16>
    %44 = vector.shape_cast %43 : vector<1x128x128xbf16> to vector<128x128xbf16>
    %cst_23 = arith.constant dense<0.000000e+00> : vector<8x128xf32>
    %45 = tpu.matmul %42, %44, %cst_23 {dimension_numbers = #tpu.dot_dimension_numbers<[1], [0], [0], [1], [0, 0, 1, 1], [], []>} : vector<8x128xbf16>, vector<128x128xbf16>, vector<8x128xf32> -> vector<8x128xf32>
    %c3_24 = arith.constant 3 : index
    %c0_25 = arith.constant 0 : index
    %c0_26 = arith.constant 0 : index
    %46 = vector.load %arg3[%c3_24, %c0_25, %c0_26] : memref<10x1x128xf32, #tpu.memory_space<vmem>>, vector<1x1x128xf32>
    %47 = vector.shape_cast %46 : vector<1x1x128xf32> to vector<1x128xf32>
    %48 = vector.broadcast %47 : vector<1x128xf32> to vector<8x128xf32>
    %49 = arith.addf %45, %48 : vector<8x128xf32>
    %cst_27 = arith.constant 0.000000e+00 : f32
    %50 = vector.broadcast %cst_27 : f32 to vector<8x128xf32>
    %51 = arith.maximumf %49, %50 : vector<8x128xf32>
    %52 = arith.truncf %51 : vector<8x128xf32> to vector<8x128xbf16>
    %c4 = arith.constant 4 : index
    %c0_28 = arith.constant 0 : index
    %c0_29 = arith.constant 0 : index
    %53 = vector.load %arg2[%c4, %c0_28, %c0_29] : memref<10x128x128xbf16, #tpu.memory_space<vmem>>, vector<1x128x128xbf16>
    %54 = vector.shape_cast %53 : vector<1x128x128xbf16> to vector<128x128xbf16>
    %cst_30 = arith.constant dense<0.000000e+00> : vector<8x128xf32>
    %55 = tpu.matmul %52, %54, %cst_30 {dimension_numbers = #tpu.dot_dimension_numbers<[1], [0], [0], [1], [0, 0, 1, 1], [], []>} : vector<8x128xbf16>, vector<128x128xbf16>, vector<8x128xf32> -> vector<8x128xf32>
    %c4_31 = arith.constant 4 : index
    %c0_32 = arith.constant 0 : index
    %c0_33 = arith.constant 0 : index
    %56 = vector.load %arg3[%c4_31, %c0_32, %c0_33] : memref<10x1x128xf32, #tpu.memory_space<vmem>>, vector<1x1x128xf32>
    %57 = vector.shape_cast %56 : vector<1x1x128xf32> to vector<1x128xf32>
    %58 = vector.broadcast %57 : vector<1x128xf32> to vector<8x128xf32>
    %59 = arith.addf %55, %58 : vector<8x128xf32>
    %cst_34 = arith.constant 0.000000e+00 : f32
    %60 = vector.broadcast %cst_34 : f32 to vector<8x128xf32>
    %61 = arith.maximumf %59, %60 : vector<8x128xf32>
    %62 = arith.truncf %61 : vector<8x128xf32> to vector<8x128xbf16>
    %c5 = arith.constant 5 : index
    %c0_35 = arith.constant 0 : index
    %c0_36 = arith.constant 0 : index
    %63 = vector.load %arg2[%c5, %c0_35, %c0_36] : memref<10x128x128xbf16, #tpu.memory_space<vmem>>, vector<1x128x128xbf16>
    %64 = vector.shape_cast %63 : vector<1x128x128xbf16> to vector<128x128xbf16>
    %cst_37 = arith.constant dense<0.000000e+00> : vector<8x128xf32>
    %65 = tpu.matmul %62, %64, %cst_37 {dimension_numbers = #tpu.dot_dimension_numbers<[1], [0], [0], [1], [0, 0, 1, 1], [], []>} : vector<8x128xbf16>, vector<128x128xbf16>, vector<8x128xf32> -> vector<8x128xf32>
    %c5_38 = arith.constant 5 : index
    %c0_39 = arith.constant 0 : index
    %c0_40 = arith.constant 0 : index
    %66 = vector.load %arg3[%c5_38, %c0_39, %c0_40] : memref<10x1x128xf32, #tpu.memory_space<vmem>>, vector<1x1x128xf32>
    %67 = vector.shape_cast %66 : vector<1x1x128xf32> to vector<1x128xf32>
    %68 = vector.broadcast %67 : vector<1x128xf32> to vector<8x128xf32>
    %69 = arith.addf %65, %68 : vector<8x128xf32>
    %cst_41 = arith.constant 0.000000e+00 : f32
    %70 = vector.broadcast %cst_41 : f32 to vector<8x128xf32>
    %71 = arith.maximumf %69, %70 : vector<8x128xf32>
    %72 = arith.truncf %71 : vector<8x128xf32> to vector<8x128xbf16>
    %c6 = arith.constant 6 : index
    %c0_42 = arith.constant 0 : index
    %c0_43 = arith.constant 0 : index
    %73 = vector.load %arg2[%c6, %c0_42, %c0_43] : memref<10x128x128xbf16, #tpu.memory_space<vmem>>, vector<1x128x128xbf16>
    %74 = vector.shape_cast %73 : vector<1x128x128xbf16> to vector<128x128xbf16>
    %cst_44 = arith.constant dense<0.000000e+00> : vector<8x128xf32>
    %75 = tpu.matmul %72, %74, %cst_44 {dimension_numbers = #tpu.dot_dimension_numbers<[1], [0], [0], [1], [0, 0, 1, 1], [], []>} : vector<8x128xbf16>, vector<128x128xbf16>, vector<8x128xf32> -> vector<8x128xf32>
    %c6_45 = arith.constant 6 : index
    %c0_46 = arith.constant 0 : index
    %c0_47 = arith.constant 0 : index
    %76 = vector.load %arg3[%c6_45, %c0_46, %c0_47] : memref<10x1x128xf32, #tpu.memory_space<vmem>>, vector<1x1x128xf32>
    %77 = vector.shape_cast %76 : vector<1x1x128xf32> to vector<1x128xf32>
    %78 = vector.broadcast %77 : vector<1x128xf32> to vector<8x128xf32>
    %79 = arith.addf %75, %78 : vector<8x128xf32>
    %cst_48 = arith.constant 0.000000e+00 : f32
    %80 = vector.broadcast %cst_48 : f32 to vector<8x128xf32>
    %81 = arith.maximumf %79, %80 : vector<8x128xf32>
    %82 = arith.truncf %81 : vector<8x128xf32> to vector<8x128xbf16>
    %c7 = arith.constant 7 : index
    %c0_49 = arith.constant 0 : index
    %c0_50 = arith.constant 0 : index
    %83 = vector.load %arg2[%c7, %c0_49, %c0_50] : memref<10x128x128xbf16, #tpu.memory_space<vmem>>, vector<1x128x128xbf16>
    %84 = vector.shape_cast %83 : vector<1x128x128xbf16> to vector<128x128xbf16>
    %cst_51 = arith.constant dense<0.000000e+00> : vector<8x128xf32>
    %85 = tpu.matmul %82, %84, %cst_51 {dimension_numbers = #tpu.dot_dimension_numbers<[1], [0], [0], [1], [0, 0, 1, 1], [], []>} : vector<8x128xbf16>, vector<128x128xbf16>, vector<8x128xf32> -> vector<8x128xf32>
    %c7_52 = arith.constant 7 : index
    %c0_53 = arith.constant 0 : index
    %c0_54 = arith.constant 0 : index
    %86 = vector.load %arg3[%c7_52, %c0_53, %c0_54] : memref<10x1x128xf32, #tpu.memory_space<vmem>>, vector<1x1x128xf32>
    %87 = vector.shape_cast %86 : vector<1x1x128xf32> to vector<1x128xf32>
    %88 = vector.broadcast %87 : vector<1x128xf32> to vector<8x128xf32>
    %89 = arith.addf %85, %88 : vector<8x128xf32>
    %cst_55 = arith.constant 0.000000e+00 : f32
    %90 = vector.broadcast %cst_55 : f32 to vector<8x128xf32>
    %91 = arith.maximumf %89, %90 : vector<8x128xf32>
    %92 = arith.truncf %91 : vector<8x128xf32> to vector<8x128xbf16>
    %c8 = arith.constant 8 : index
    %c0_56 = arith.constant 0 : index
    %c0_57 = arith.constant 0 : index
    %93 = vector.load %arg2[%c8, %c0_56, %c0_57] : memref<10x128x128xbf16, #tpu.memory_space<vmem>>, vector<1x128x128xbf16>
    %94 = vector.shape_cast %93 : vector<1x128x128xbf16> to vector<128x128xbf16>
    %cst_58 = arith.constant dense<0.000000e+00> : vector<8x128xf32>
    %95 = tpu.matmul %92, %94, %cst_58 {dimension_numbers = #tpu.dot_dimension_numbers<[1], [0], [0], [1], [0, 0, 1, 1], [], []>} : vector<8x128xbf16>, vector<128x128xbf16>, vector<8x128xf32> -> vector<8x128xf32>
    %c8_59 = arith.constant 8 : index
    %c0_60 = arith.constant 0 : index
    %c0_61 = arith.constant 0 : index
    %96 = vector.load %arg3[%c8_59, %c0_60, %c0_61] : memref<10x1x128xf32, #tpu.memory_space<vmem>>, vector<1x1x128xf32>
    %97 = vector.shape_cast %96 : vector<1x1x128xf32> to vector<1x128xf32>
    %98 = vector.broadcast %97 : vector<1x128xf32> to vector<8x128xf32>
    %99 = arith.addf %95, %98 : vector<8x128xf32>
    %cst_62 = arith.constant 0.000000e+00 : f32
    %100 = vector.broadcast %cst_62 : f32 to vector<8x128xf32>
    %101 = arith.maximumf %99, %100 : vector<8x128xf32>
    %102 = arith.truncf %101 : vector<8x128xf32> to vector<8x128xbf16>
    %c9 = arith.constant 9 : index
    %c0_63 = arith.constant 0 : index
    %c0_64 = arith.constant 0 : index
    %103 = vector.load %arg2[%c9, %c0_63, %c0_64] : memref<10x128x128xbf16, #tpu.memory_space<vmem>>, vector<1x128x128xbf16>
    %104 = vector.shape_cast %103 : vector<1x128x128xbf16> to vector<128x128xbf16>
    %cst_65 = arith.constant dense<0.000000e+00> : vector<8x128xf32>
    %105 = tpu.matmul %102, %104, %cst_65 {dimension_numbers = #tpu.dot_dimension_numbers<[1], [0], [0], [1], [0, 0, 1, 1], [], []>} : vector<8x128xbf16>, vector<128x128xbf16>, vector<8x128xf32> -> vector<8x128xf32>
    %c9_66 = arith.constant 9 : index
    %c0_67 = arith.constant 0 : index
    %c0_68 = arith.constant 0 : index
    %106 = vector.load %arg3[%c9_66, %c0_67, %c0_68] : memref<10x1x128xf32, #tpu.memory_space<vmem>>, vector<1x1x128xf32>
    %107 = vector.shape_cast %106 : vector<1x1x128xf32> to vector<1x128xf32>
    %108 = vector.broadcast %107 : vector<1x128xf32> to vector<8x128xf32>
    %109 = arith.addf %105, %108 : vector<8x128xf32>
    %110 = vector.extract_strided_slice %109 {offsets = [0, 0], sizes = [8, 2], strides = [1, 1]} : vector<8x128xf32> to vector<8x2xf32>
    %c0_69 = arith.constant 0 : index
    %c0_70 = arith.constant 0 : index
    %111 = vector.load %arg4[%c0_69, %c0_70] : memref<8x2xf32, #tpu.memory_space<vmem>>, vector<8x2xf32>
    tpu.vector_store %arg4[%c0_69, %c0_70], %110 {strides = array<i32>} : memref<8x2xf32, #tpu.memory_space<vmem>>, vector<8x2xf32>,
    return
  }
  func.func @transform_0(%arg0: i32) -> (i32, i32) {
    %c0_i32 = arith.constant 0 : i32
    %c0_i32_0 = arith.constant 0 : i32
    return %arg0, %c0_i32 : i32, i32
  }
  func.func @transform_1(%arg0: i32) -> (i32, i32, i32) {
    %c0_i32 = arith.constant 0 : i32
    %c0_i32_0 = arith.constant 0 : i32
    %c0_i32_1 = arith.constant 0 : i32
    %c0_i32_2 = arith.constant 0 : i32
    return %c0_i32, %c0_i32_0, %c0_i32_1 : i32, i32, i32
  }
  func.func @transform_2(%arg0: i32) -> (i32, i32, i32) {
    %c0_i32 = arith.constant 0 : i32
    %c0_i32_0 = arith.constant 0 : i32
    %c0_i32_1 = arith.constant 0 : i32
    %c0_i32_2 = arith.constant 0 : i32
    return %c0_i32, %c0_i32_0, %c0_i32_1 : i32, i32, i32
  }
  func.func @transform_3(%arg0: i32) -> (i32, i32) {
    %c0_i32 = arith.constant 0 : i32
    %c0_i32_0 = arith.constant 0 : i32
    return %arg0, %c0_i32 : i32, i32
  }
}

</mosaic_0001>

<llo_original>
// kernel: distance2_forward.1
$region0: #{distance2_forward.1}
  #allocation0 [shape = 'u32[]', space=smem, size = 0x4, offset = 0x4, fixed_abs, tag = 'smem constant byte address 0x4 - core index']
  #allocation1 [shape = 'u32[144,128]{1,0:T(1,128)}', space=vmem, size = 0x12000, scoped, tag = 'internal scratch']
  %s0 = inlined_call_operand.vmem [shape: f32[8,2], index: 0, kind: input, shape index: {}]
  %s1 = inlined_call_operand.hbm [shape: bf16[10,128,128], index: 1, kind: input, shape index: {}]
  %s2 = inlined_call_operand.vmem [shape: f32[10,1,128], index: 2, kind: input, shape index: {}]
  %s3 = inlined_call_operand.vmem [shape: f32[8,2], index: 3, kind: output, shape index: {}]
  %s4 = sld [smem:[#allocation0]]
  $region26: #{distance2_forward.1} parent=0
    _
  %s6 = ssub.s32 1, %s4
  %s7 = scalar_select 0, %s6, %s4
  $region1: #{distance2_forward.1} parent=0
    #allocation2 [shape = 'u8[327680]{0}', space=vmem, size = 0x50000, scoped, tag = 'input window, operand 1, single buffered']
    #allocation3 [shape = 's32[1]{0}', space=sflag, size = 0x4, scoped, tag = 'scoped memory for distance2_forward.1']
    %8 = vsyncpa [#allocation3], 0
    // Predicated region
    $region2: #{distance2_forward.1} parent=1 // pred_check
      _
    $region3: #{distance2_forward.1} parent=1 // pred_check_branch
      %10 = sbr.rel (0) target = $region5
    $region4: #{distance2_forward.1} parent=1 // pred_region
      _
    $region5: #{distance2_forward.1} parent=1 // pred_fallthru
      _
    // Predicated region
    $region6: #{distance2_forward.1} parent=1 // pred_check
      _
    $region7: #{distance2_forward.1} parent=1 // pred_check_branch
      %12 = sbr.rel (0) target = $region9
    $region8: #{distance2_forward.1} parent=1 // pred_region
      %s14 = ssub.s32 10240, 10240
      %15 = vsyncadd [#allocation3], %s14
      %s16 = sshll.u32 [#allocation2], 4
      %s17 = int_to_ptr.vmem [resolvable:$true] %s16
      %22 = dma.hbm_to_vmem [thread:$0]  %s1, 10240, %s17, [#allocation3], 64, 64, 4
    $region9: #{distance2_forward.1} parent=1 // pred_fallthru
      _
    // Predicated region
    $region10: #{distance2_forward.1} parent=1 // pred_check
      _
    $region11: #{distance2_forward.1} parent=1 // pred_check_branch
      %24 = sbr.rel (0) target = $region13
    $region12: #{distance2_forward.1} parent=1 // pred_region
      _
    $region13: #{distance2_forward.1} parent=1 // pred_fallthru
      _
    // Predicated region
    $region14: #{distance2_forward.1} parent=1 // pred_check
      _
    $region15: #{distance2_forward.1} parent=1 // pred_check_branch
      %26 = sbr.rel (0) target = $region17
    $region16: #{distance2_forward.1} parent=1 // pred_region
      %27 = dma.done [#allocation3], 10240
    $region17: #{distance2_forward.1} parent=1 // pred_fallthru
      _
    %v29 = vld [vmem:[%s0] sm:$0xff]
    %v30 = vld [vmem:[#allocation2] sm:$0xf]
    %v31 = vunpack.c.l.bf16 %v30
    %33 = vset.pattern.permute.xlu0 0
    %34 = vperm.xlu0 %33, %v29
    %v35 = vpop.permute.xlu0 %34
    %v37 = vlaneseq
    %v38 = vshrl.u32 %v37, 7
    %v39 = vsub.s32 0, %v38
    %v40 = vrot.slane %v31, %v39
    %v41 = vmul.f32 %v35, %v40
    %v42 = vld [vmem:[%s2] sm:$0x1]
    %v44 = vlaneseq
    %v45 = vshrl.u32 %v44, 7
    %v46 = vsub.s32 0, %v45
    %v47 = vrot.slane %v42, %v46
    %v49 = vadd.f32 %v41, %v47
    %50 = vset.pattern.permute.xlu0 1
    %51 = vperm.xlu0 %50, %v29
    %v52 = vpop.permute.xlu0 %51
    %v54 = vlaneseq
    %v55 = vshrl.u32 %v54, 7
    %v56 = vsub.s32 1, %v55
    %v57 = vrot.slane %v31, %v56
    %v58 = vmul.f32 %v52, %v57
    %v59 = vadd.f32 %v49, %v58
    %v60 = vmax.f32 %v59, 0.0
    %v61 = vpack.c.bf16 %v60, %v60
    %s62 = scalar_lea.vmem [#allocation2], 64
    %v63 = vld [vmem:[%s62] sm:$0xf]
    %v64 = vld [vmem:[%s62 + $0x4] sm:$0xf]
    %v65 = vld [vmem:[%s62 + $0x8] sm:$0xf]
    %v66 = vld [vmem:[%s62 + $0xc] sm:$0xf]
    %v67 = vld [vmem:[%s62 + $0x10] sm:$0xf]
    %v68 = vld [vmem:[%s62 + $0x14] sm:$0xf]
    %v69 = vld [vmem:[%s62 + $0x18] sm:$0xf]
    %v70 = vld [vmem:[%s62 + $0x1c] sm:$0xf]
    %v71 = vld [vmem:[%s62 + $0x20] sm:$0xf]
    %v72 = vld [vmem:[%s62 + $0x24] sm:$0xf]
    %v73 = vld [vmem:[%s62 + $0x28] sm:$0xf]
    %v74 = vld [vmem:[%s62 + $0x2c] sm:$0xf]
    %v75 = vld [vmem:[%s62 + $0x30] sm:$0xf]
    %v76 = vld [vmem:[%s62 + $0x34] sm:$0xf]
    %v77 = vld [vmem:[%s62 + $0x38] sm:$0xf]
    %v78 = vld [vmem:[%s62 + $0x3c] sm:$0xf]
    %s79 = scalar_lea.vmem %s2, 1
    %v80 = vld [vmem:[%s79] sm:$0x1]
    %v82 = vlaneseq
    %v83 = vshrl.u32 %v82, 7
    %v84 = vsub.s32 0, %v83
    %v85 = vrot.slane %v80, %v84
    %v103 = vunpack.c.l.b16 %v63
    %v104 = vunpack.c.l.b16 %v64
    %v105 = vunpack.c.l.b16 %v65
    %v106 = vunpack.c.l.b16 %v66
    %v107 = vunpack.c.l.b16 %v67
    %v108 = vunpack.c.l.b16 %v68
    %v109 = vunpack.c.l.b16 %v69
    %v110 = vunpack.c.l.b16 %v70
    %v111 = vunpack.c.l.b16 %v71
    %v112 = vunpack.c.l.b16 %v72
    %v113 = vunpack.c.l.b16 %v73
    %v114 = vunpack.c.l.b16 %v74
    %v115 = vunpack.c.l.b16 %v75
    %v116 = vunpack.c.l.b16 %v76
    %v117 = vunpack.c.l.b16 %v77
    %v118 = vunpack.c.l.b16 %v78
    %v119 = vpack.c.b16 %v104, %v103
    %v120 = vpack.c.b16 %v106, %v105
    %v121 = vpack.c.b16 %v108, %v107
    %v122 = vpack.c.b16 %v110, %v109
    %v123 = vpack.c.b16 %v112, %v111
    %v124 = vpack.c.b16 %v114, %v113
    %v125 = vpack.c.b16 %v116, %v115
    %v126 = vpack.c.b16 %v118, %v117
    %135 = vmatprep.subr.bf16.mxu0 0
    %136 = vmatpush1.bf16.msra.mxu0 %v119
    %137 = vmatprep.subr.bf16.mxu0 0
    %138 = vmatpush1.bf16.msra.mxu0 %v120
    %139 = vmatprep.subr.bf16.mxu0 0
    %140 = vmatpush1.bf16.msra.mxu0 %v121
    %141 = vmatprep.subr.bf16.mxu0 0
    %142 = vmatpush1.bf16.msra.mxu0 %v122
    %143 = vmatprep.subr.bf16.mxu0 0
    %144 = vmatpush1.bf16.msra.mxu0 %v123
    %145 = vmatprep.subr.bf16.mxu0 0
    %146 = vmatpush1.bf16.msra.mxu0 %v124
    %147 = vmatprep.subr.bf16.mxu0 0
    %148 = vmatpush1.bf16.msra.mxu0 %v125
    %149 = vmatprep.subr.bf16.mxu0 0
    %150 = vmatpush1.bf16.msra.mxu0 %v126
    %151 = vmatprep.subr.bf16.mxu0 0
    %152 = vmatpush1.bf16.msra.mxu0 0
    %153 = vmatprep.subr.bf16.mxu0 0
    %154 = vmatpush1.bf16.msra.mxu0 0
    %155 = vmatprep.subr.bf16.mxu0 0
    %156 = vmatpush1.bf16.msra.mxu0 0
    %157 = vmatprep.subr.bf16.mxu0 0
    %158 = vmatpush1.bf16.msra.mxu0 0
    %159 = vmatprep.subr.bf16.mxu0 0
    %160 = vmatpush1.bf16.msra.mxu0 0
    %161 = vmatprep.subr.bf16.mxu0 0
    %162 = vmatpush1.bf16.msra.mxu0 0
    %163 = vmatprep.subr.bf16.mxu0 0
    %164 = vmatpush1.bf16.msra.mxu0 0
    %165 = vmatprep.subr.bf16.mxu0 0
    %166 = vmatpush1.bf16.msra.mxu0 0
    %167 = vmatprep.mubr.bf16.mxu0 0
    %168 = vmatmul.mubr.bf16.gmra.mrb[0].mxu0 %v61
    %v169 = vpop.f32.mrb[0].mxu0
    %v170 = vadd.f32 %v85, %v169
    %v171 = vpop.f32.mrb[0].mxu0
    %v172 = vpop.f32.mrb[0].mxu0
    %v173 = vpop.f32.mrb[0].mxu0
    %174 = vdwg.mxu0
    %v175 = vmax.f32 %v170, 0.0
    %v176 = vpack.c.bf16 %v175, %v175
    %s177 = scalar_lea.vmem [#allocation2], 128
    %v178 = vld [vmem:[%s177] sm:$0xf]
    %v179 = vld [vmem:[%s177 + $0x4] sm:$0xf]
    %v180 = vld [vmem:[%s177 + $0x8] sm:$0xf]
    %v181 = vld [vmem:[%s177 + $0xc] sm:$0xf]
    %v182 = vld [vmem:[%s177 + $0x10] sm:$0xf]
    %v183 = vld [vmem:[%s177 + $0x14] sm:$0xf]
    %v184 = vld [vmem:[%s177 + $0x18] sm:$0xf]
    %v185 = vld [vmem:[%s177 + $0x1c] sm:$0xf]
    %v186 = vld [vmem:[%s177 + $0x20] sm:$0xf]
    %v187 = vld [vmem:[%s177 + $0x24] sm:$0xf]
    %v188 = vld [vmem:[%s177 + $0x28] sm:$0xf]
    %v189 = vld [vmem:[%s177 + $0x2c] sm:$0xf]
    %v190 = vld [vmem:[%s177 + $0x30] sm:$0xf]
    %v191 = vld [vmem:[%s177 + $0x34] sm:$0xf]
    %v192 = vld [vmem:[%s177 + $0x38] sm:$0xf]
    %v193 = vld [vmem:[%s177 + $0x3c] sm:$0xf]
    %s194 = scalar_lea.vmem %s2, 2
    %v195 = vld [vmem:[%s194] sm:$0x1]
    %v197 = vlaneseq
    %v198 = vshrl.u32 %v197, 7
    %v199 = vsub.s32 0, %v198
    %v200 = vrot.slane %v195, %v199
    %v218 = vunpack.c.l.b16 %v178
    %v219 = vunpack.c.l.b16 %v179
    %v220 = vunpack.c.l.b16 %v180
    %v221 = vunpack.c.l.b16 %v181
    %v222 = vunpack.c.l.b16 %v182
    %v223 = vunpack.c.l.b16 %v183
    %v224 = vunpack.c.l.b16 %v184
    %v225 = vunpack.c.l.b16 %v185
    %v226 = vunpack.c.l.b16 %v186
    %v227 = vunpack.c.l.b16 %v187
    %v228 = vunpack.c.l.b16 %v188
    %v229 = vunpack.c.l.b16 %v189
    %v230 = vunpack.c.l.b16 %v190
    %v231 = vunpack.c.l.b16 %v191
    %v232 = vunpack.c.l.b16 %v192
    %v233 = vunpack.c.l.b16 %v193
    %v234 = vpack.c.b16 %v219, %v218
    %v235 = vpack.c.b16 %v221, %v220
    %v236 = vpack.c.b16 %v223, %v222
    %v237 = vpack.c.b16 %v225, %v224
    %v238 = vpack.c.b16 %v227, %v226
    %v239 = vpack.c.b16 %v229, %v228
    %v240 = vpack.c.b16 %v231, %v230
    %v241 = vpack.c.b16 %v233, %v232
    %250 = vmatprep.subr.bf16.mxu0 0
    %251 = vmatpush1.bf16.msra.mxu0 %v234
    %252 = vmatprep.subr.bf16.mxu0 0
    %253 = vmatpush1.bf16.msra.mxu0 %v235
    %254 = vmatprep.subr.bf16.mxu0 0
    %255 = vmatpush1.bf16.msra.mxu0 %v236
    %256 = vmatprep.subr.bf16.mxu0 0
    %257 = vmatpush1.bf16.msra.mxu0 %v237
    %258 = vmatprep.subr.bf16.mxu0 0
    %259 = vmatpush1.bf16.msra.mxu0 %v238
    %260 = vmatprep.subr.bf16.mxu0 0
    %261 = vmatpush1.bf16.msra.mxu0 %v239
    %262 = vmatprep.subr.bf16.mxu0 0
    %263 = vmatpush1.bf16.msra.mxu0 %v240
    %264 = vmatprep.subr.bf16.mxu0 0
    %265 = vmatpush1.bf16.msra.mxu0 %v241
    %266 = vmatprep.subr.bf16.mxu0 0
    %267 = vmatpush1.bf16.msra.mxu0 0
    %268 = vmatprep.subr.bf16.mxu0 0
    %269 = vmatpush1.bf16.msra.mxu0 0
    %270 = vmatprep.subr.bf16.mxu0 0
    %271 = vmatpush1.bf16.msra.mxu0 0
    %272 = vmatprep.subr.bf16.mxu0 0
    %273 = vmatpush1.bf16.msra.mxu0 0
    %274 = vmatprep.subr.bf16.mxu0 0
    %275 = vmatpush1.bf16.msra.mxu0 0
    %276 = vmatprep.subr.bf16.mxu0 0
    %277 = vmatpush1.bf16.msra.mxu0 0
    %278 = vmatprep.subr.bf16.mxu0 0
    %279 = vmatpush1.bf16.msra.mxu0 0
    %280 = vmatprep.subr.bf16.mxu0 0
    %281 = vmatpush1.bf16.msra.mxu0 0
    %282 = vmatprep.mubr.bf16.mxu0 0
    %283 = vmatmul.mubr.bf16.gmra.mrb[0].mxu0 %v176
    %v284 = vpop.f32.mrb[0].mxu0
    %v285 = vadd.f32 %v200, %v284
    %v286 = vpop.f32.mrb[0].mxu0
    %v287 = vpop.f32.mrb[0].mxu0
    %v288 = vpop.f32.mrb[0].mxu0
    %289 = vdwg.mxu0
    %v290 = vmax.f32 %v285, 0.0
    %v291 = vpack.c.bf16 %v290, %v290
    %s292 = scalar_lea.vmem [#allocation2], 192
    %v293 = vld [vmem:[%s292] sm:$0xf]
    %v294 = vld [vmem:[%s292 + $0x4] sm:$0xf]
    %v295 = vld [vmem:[%s292 + $0x8] sm:$0xf]
    %v296 = vld [vmem:[%s292 + $0xc] sm:$0xf]
    %v297 = vld [vmem:[%s292 + $0x10] sm:$0xf]
    %v298 = vld [vmem:[%s292 + $0x14] sm:$0xf]
    %v299 = vld [vmem:[%s292 + $0x18] sm:$0xf]
    %v300 = vld [vmem:[%s292 + $0x1c] sm:$0xf]
    %v301 = vld [vmem:[%s292 + $0x20] sm:$0xf]
    %v302 = vld [vmem:[%s292 + $0x24] sm:$0xf]
    %v303 = vld [vmem:[%s292 + $0x28] sm:$0xf]
    %v304 = vld [vmem:[%s292 + $0x2c] sm:$0xf]
    %v305 = vld [vmem:[%s292 + $0x30] sm:$0xf]
    %v306 = vld [vmem:[%s292 + $0x34] sm:$0xf]
    %v307 = vld [vmem:[%s292 + $0x38] sm:$0xf]
    %v308 = vld [vmem:[%s292 + $0x3c] sm:$0xf]
    %s309 = scalar_lea.vmem %s2, 3
    %v310 = vld [vmem:[%s309] sm:$0x1]
    %v312 = vlaneseq
    %v313 = vshrl.u32 %v312, 7
    %v314 = vsub.s32 0, %v313
    %v315 = vrot.slane %v310, %v314
    %v333 = vunpack.c.l.b16 %v293
    %v334 = vunpack.c.l.b16 %v294
    %v335 = vunpack.c.l.b16 %v295
    %v336 = vunpack.c.l.b16 %v296
    %v337 = vunpack.c.l.b16 %v297
    %v338 = vunpack.c.l.b16 %v298
    %v339 = vunpack.c.l.b16 %v299
    %v340 = vunpack.c.l.b16 %v300
    %v341 = vunpack.c.l.b16 %v301
    %v342 = vunpack.c.l.b16 %v302
    %v343 = vunpack.c.l.b16 %v303
    %v344 = vunpack.c.l.b16 %v304
    %v345 = vunpack.c.l.b16 %v305
    %v346 = vunpack.c.l.b16 %v306
    %v347 = vunpack.c.l.b16 %v307
    %v348 = vunpack.c.l.b16 %v308
    %v349 = vpack.c.b16 %v334, %v333
    %v350 = vpack.c.b16 %v336, %v335
    %v351 = vpack.c.b16 %v338, %v337
    %v352 = vpack.c.b16 %v340, %v339
    %v353 = vpack.c.b16 %v342, %v341
    %v354 = vpack.c.b16 %v344, %v343
    %v355 = vpack.c.b16 %v346, %v345
    %v356 = vpack.c.b16 %v348, %v347
    %365 = vmatprep.subr.bf16.mxu0 0
    %366 = vmatpush1.bf16.msra.mxu0 %v349
    %367 = vmatprep.subr.bf16.mxu0 0
    %368 = vmatpush1.bf16.msra.mxu0 %v350
    %369 = vmatprep.subr.bf16.mxu0 0
    %370 = vmatpush1.bf16.msra.mxu0 %v351
    %371 = vmatprep.subr.bf16.mxu0 0
    %372 = vmatpush1.bf16.msra.mxu0 %v352
    %373 = vmatprep.subr.bf16.mxu0 0
    %374 = vmatpush1.bf16.msra.mxu0 %v353
    %375 = vmatprep.subr.bf16.mxu0 0
    %376 = vmatpush1.bf16.msra.mxu0 %v354
    %377 = vmatprep.subr.bf16.mxu0 0
    %378 = vmatpush1.bf16.msra.mxu0 %v355
    %379 = vmatprep.subr.bf16.mxu0 0
    %380 = vmatpush1.bf16.msra.mxu0 %v356
    %381 = vmatprep.subr.bf16.mxu0 0
    %382 = vmatpush1.bf16.msra.mxu0 0
    %383 = vmatprep.subr.bf16.mxu0 0
    %384 = vmatpush1.bf16.msra.mxu0 0
    %385 = vmatprep.subr.bf16.mxu0 0
    %386 = vmatpush1.bf16.msra.mxu0 0
    %387 = vmatprep.subr.bf16.mxu0 0
    %388 = vmatpush1.bf16.msra.mxu0 0
    %389 = vmatprep.subr.bf16.mxu0 0
    %390 = vmatpush1.bf16.msra.mxu0 0
    %391 = vmatprep.subr.bf16.mxu0 0
    %392 = vmatpush1.bf16.msra.mxu0 0
    %393 = vmatprep.subr.bf16.mxu0 0
    %394 = vmatpush1.bf16.msra.mxu0 0
    %395 = vmatprep.subr.bf16.mxu0 0
    %396 = vmatpush1.bf16.msra.mxu0 0
    %397 = vmatprep.mubr.bf16.mxu0 0
    %398 = vmatmul.mubr.bf16.gmra.mrb[0].mxu0 %v291
    %v399 = vpop.f32.mrb[0].mxu0
    %v400 = vadd.f32 %v315, %v399
    %v401 = vpop.f32.mrb[0].mxu0
    %v402 = vpop.f32.mrb[0].mxu0
    %v403 = vpop.f32.mrb[0].mxu0
    %404 = vdwg.mxu0
    %v405 = vmax.f32 %v400, 0.0
    %v406 = vpack.c.bf16 %v405, %v405
    %s407 = scalar_lea.vmem [#allocation2], 256
    %v408 = vld [vmem:[%s407] sm:$0xf]
    %v409 = vld [vmem:[%s407 + $0x4] sm:$0xf]
    %v410 = vld [vmem:[%s407 + $0x8] sm:$0xf]
    %v411 = vld [vmem:[%s407 + $0xc] sm:$0xf]
    %v412 = vld [vmem:[%s407 + $0x10] sm:$0xf]
    %v413 = vld [vmem:[%s407 + $0x14] sm:$0xf]
    %v414 = vld [vmem:[%s407 + $0x18] sm:$0xf]
    %v415 = vld [vmem:[%s407 + $0x1c] sm:$0xf]
    %v416 = vld [vmem:[%s407 + $0x20] sm:$0xf]
    %v417 = vld [vmem:[%s407 + $0x24] sm:$0xf]
    %v418 = vld [vmem:[%s407 + $0x28] sm:$0xf]
    %v419 = vld [vmem:[%s407 + $0x2c] sm:$0xf]
    %v420 = vld [vmem:[%s407 + $0x30] sm:$0xf]
    %v421 = vld [vmem:[%s407 + $0x34] sm:$0xf]
    %v422 = vld [vmem:[%s407 + $0x38] sm:$0xf]
    %v423 = vld [vmem:[%s407 + $0x3c] sm:$0xf]
    %s424 = scalar_lea.vmem %s2, 4
    %v425 = vld [vmem:[%s424] sm:$0x1]
    %v427 = vlaneseq
    %v428 = vshrl.u32 %v427, 7
    %v429 = vsub.s32 0, %v428
    %v430 = vrot.slane %v425, %v429
    %v448 = vunpack.c.l.b16 %v408
    %v449 = vunpack.c.l.b16 %v409
    %v450 = vunpack.c.l.b16 %v410
    %v451 = vunpack.c.l.b16 %v411
    %v452 = vunpack.c.l.b16 %v412
    %v453 = vunpack.c.l.b16 %v413
    %v454 = vunpack.c.l.b16 %v414
    %v455 = vunpack.c.l.b16 %v415
    %v456 = vunpack.c.l.b16 %v416
    %v457 = vunpack.c.l.b16 %v417
    %v458 = vunpack.c.l.b16 %v418
    %v459 = vunpack.c.l.b16 %v419
    %v460 = vunpack.c.l.b16 %v420
    %v461 = vunpack.c.l.b16 %v421
    %v462 = vunpack.c.l.b16 %v422
    %v463 = vunpack.c.l.b16 %v423
    %v464 = vpack.c.b16 %v449, %v448
    %v465 = vpack.c.b16 %v451, %v450
    %v466 = vpack.c.b16 %v453, %v452
    %v467 = vpack.c.b16 %v455, %v454
    %v468 = vpack.c.b16 %v457, %v456
    %v469 = vpack.c.b16 %v459, %v458
    %v470 = vpack.c.b16 %v461, %v460
    %v471 = vpack.c.b16 %v463, %v462
    %480 = vmatprep.subr.bf16.mxu0 0
    %481 = vmatpush1.bf16.msra.mxu0 %v464
    %482 = vmatprep.subr.bf16.mxu0 0
    %483 = vmatpush1.bf16.msra.mxu0 %v465
    %484 = vmatprep.subr.bf16.mxu0 0
    %485 = vmatpush1.bf16.msra.mxu0 %v466
    %486 = vmatprep.subr.bf16.mxu0 0
    %487 = vmatpush1.bf16.msra.mxu0 %v467
    %488 = vmatprep.subr.bf16.mxu0 0
    %489 = vmatpush1.bf16.msra.mxu0 %v468
    %490 = vmatprep.subr.bf16.mxu0 0
    %491 = vmatpush1.bf16.msra.mxu0 %v469
    %492 = vmatprep.subr.bf16.mxu0 0
    %493 = vmatpush1.bf16.msra.mxu0 %v470
    %494 = vmatprep.subr.bf16.mxu0 0
    %495 = vmatpush1.bf16.msra.mxu0 %v471
    %496 = vmatprep.subr.bf16.mxu0 0
    %497 = vmatpush1.bf16.msra.mxu0 0
    %498 = vmatprep.subr.bf16.mxu0 0
    %499 = vmatpush1.bf16.msra.mxu0 0
    %500 = vmatprep.subr.bf16.mxu0 0
    %501 = vmatpush1.bf16.msra.mxu0 0
    %502 = vmatprep.subr.bf16.mxu0 0
    %503 = vmatpush1.bf16.msra.mxu0 0
    %504 = vmatprep.subr.bf16.mxu0 0
    %505 = vmatpush1.bf16.msra.mxu0 0
    %506 = vmatprep.subr.bf16.mxu0 0
    %507 = vmatpush1.bf16.msra.mxu0 0
    %508 = vmatprep.subr.bf16.mxu0 0
    %509 = vmatpush1.bf16.msra.mxu0 0
    %510 = vmatprep.subr.bf16.mxu0 0
    %511 = vmatpush1.bf16.msra.mxu0 0
    %512 = vmatprep.mubr.bf16.mxu0 0
    %513 = vmatmul.mubr.bf16.gmra.mrb[0].mxu0 %v406
    %v514 = vpop.f32.mrb[0].mxu0
    %v515 = vadd.f32 %v430, %v514
    %v516 = vpop.f32.mrb[0].mxu0
    %v517 = vpop.f32.mrb[0].mxu0
    %v518 = vpop.f32.mrb[0].mxu0
    %519 = vdwg.mxu0
    %v520 = vmax.f32 %v515, 0.0
    %v521 = vpack.c.bf16 %v520, %v520
    %s522 = scalar_lea.vmem [#allocation2], 320
    %v523 = vld [vmem:[%s522] sm:$0xf]
    %v524 = vld [vmem:[%s522 + $0x4] sm:$0xf]
    %v525 = vld [vmem:[%s522 + $0x8] sm:$0xf]
    %v526 = vld [vmem:[%s522 + $0xc] sm:$0xf]
    %v527 = vld [vmem:[%s522 + $0x10] sm:$0xf]
    %v528 = vld [vmem:[%s522 + $0x14] sm:$0xf]
    %v529 = vld [vmem:[%s522 + $0x18] sm:$0xf]
    %v530 = vld [vmem:[%s522 + $0x1c] sm:$0xf]
    %v531 = vld [vmem:[%s522 + $0x20] sm:$0xf]
    %v532 = vld [vmem:[%s522 + $0x24] sm:$0xf]
    %v533 = vld [vmem:[%s522 + $0x28] sm:$0xf]
    %v534 = vld [vmem:[%s522 + $0x2c] sm:$0xf]
    %v535 = vld [vmem:[%s522 + $0x30] sm:$0xf]
    %v536 = vld [vmem:[%s522 + $0x34] sm:$0xf]
    %v537 = vld [vmem:[%s522 + $0x38] sm:$0xf]
    %v538 = vld [vmem:[%s522 + $0x3c] sm:$0xf]
    %s539 = scalar_lea.vmem %s2, 5
    %v540 = vld [vmem:[%s539] sm:$0x1]
    %v542 = vlaneseq
    %v543 = vshrl.u32 %v542, 7
    %v544 = vsub.s32 0, %v543
    %v545 = vrot.slane %v540, %v544
    %v563 = vunpack.c.l.b16 %v523
    %v564 = vunpack.c.l.b16 %v524
    %v565 = vunpack.c.l.b16 %v525
    %v566 = vunpack.c.l.b16 %v526
    %v567 = vunpack.c.l.b16 %v527
    %v568 = vunpack.c.l.b16 %v528
    %v569 = vunpack.c.l.b16 %v529
    %v570 = vunpack.c.l.b16 %v530
    %v571 = vunpack.c.l.b16 %v531
    %v572 = vunpack.c.l.b16 %v532
    %v573 = vunpack.c.l.b16 %v533
    %v574 = vunpack.c.l.b16 %v534
    %v575 = vunpack.c.l.b16 %v535
    %v576 = vunpack.c.l.b16 %v536
    %v577 = vunpack.c.l.b16 %v537
    %v578 = vunpack.c.l.b16 %v538
    %v579 = vpack.c.b16 %v564, %v563
    %v580 = vpack.c.b16 %v566, %v565
    %v581 = vpack.c.b16 %v568, %v567
    %v582 = vpack.c.b16 %v570, %v569
    %v583 = vpack.c.b16 %v572, %v571
    %v584 = vpack.c.b16 %v574, %v573
    %v585 = vpack.c.b16 %v576, %v575
    %v586 = vpack.c.b16 %v578, %v577
    %595 = vmatprep.subr.bf16.mxu0 0
    %596 = vmatpush1.bf16.msra.mxu0 %v579
    %597 = vmatprep.subr.bf16.mxu0 0
    %598 = vmatpush1.bf16.msra.mxu0 %v580
    %599 = vmatprep.subr.bf16.mxu0 0
    %600 = vmatpush1.bf16.msra.mxu0 %v581
    %601 = vmatprep.subr.bf16.mxu0 0
    %602 = vmatpush1.bf16.msra.mxu0 %v582
    %603 = vmatprep.subr.bf16.mxu0 0
    %604 = vmatpush1.bf16.msra.mxu0 %v583
    %605 = vmatprep.subr.bf16.mxu0 0
    %606 = vmatpush1.bf16.msra.mxu0 %v584
    %607 = vmatprep.subr.bf16.mxu0 0
    %608 = vmatpush1.bf16.msra.mxu0 %v585
    %609 = vmatprep.subr.bf16.mxu0 0
    %610 = vmatpush1.bf16.msra.mxu0 %v586
    %611 = vmatprep.subr.bf16.mxu0 0
    %612 = vmatpush1.bf16.msra.mxu0 0
    %613 = vmatprep.subr.bf16.mxu0 0
    %614 = vmatpush1.bf16.msra.mxu0 0
    %615 = vmatprep.subr.bf16.mxu0 0
    %616 = vmatpush1.bf16.msra.mxu0 0
    %617 = vmatprep.subr.bf16.mxu0 0
    %618 = vmatpush1.bf16.msra.mxu0 0
    %619 = vmatprep.subr.bf16.mxu0 0
    %620 = vmatpush1.bf16.msra.mxu0 0
    %621 = vmatprep.subr.bf16.mxu0 0
    %622 = vmatpush1.bf16.msra.mxu0 0
    %623 = vmatprep.subr.bf16.mxu0 0
    %624 = vmatpush1.bf16.msra.mxu0 0
    %625 = vmatprep.subr.bf16.mxu0 0
    %626 = vmatpush1.bf16.msra.mxu0 0
    %627 = vmatprep.mubr.bf16.mxu0 0
    %628 = vmatmul.mubr.bf16.gmra.mrb[0].mxu0 %v521
    %v629 = vpop.f32.mrb[0].mxu0
    %v630 = vadd.f32 %v545, %v629
    %v631 = vpop.f32.mrb[0].mxu0
    %v632 = vpop.f32.mrb[0].mxu0
    %v633 = vpop.f32.mrb[0].mxu0
    %634 = vdwg.mxu0
    %v635 = vmax.f32 %v630, 0.0
    %v636 = vpack.c.bf16 %v635, %v635
    %s637 = scalar_lea.vmem [#allocation2], 384
    %v638 = vld [vmem:[%s637] sm:$0xf]
    %v639 = vld [vmem:[%s637 + $0x4] sm:$0xf]
    %v640 = vld [vmem:[%s637 + $0x8] sm:$0xf]
    %v641 = vld [vmem:[%s637 + $0xc] sm:$0xf]
    %v642 = vld [vmem:[%s637 + $0x10] sm:$0xf]
    %v643 = vld [vmem:[%s637 + $0x14] sm:$0xf]
    %v644 = vld [vmem:[%s637 + $0x18] sm:$0xf]
    %v645 = vld [vmem:[%s637 + $0x1c] sm:$0xf]
    %v646 = vld [vmem:[%s637 + $0x20] sm:$0xf]
    %v647 = vld [vmem:[%s637 + $0x24] sm:$0xf]
    %v648 = vld [vmem:[%s637 + $0x28] sm:$0xf]
    %v649 = vld [vmem:[%s637 + $0x2c] sm:$0xf]
    %v650 = vld [vmem:[%s637 + $0x30] sm:$0xf]
    %v651 = vld [vmem:[%s637 + $0x34] sm:$0xf]
    %v652 = vld [vmem:[%s637 + $0x38] sm:$0xf]
    %v653 = vld [vmem:[%s637 + $0x3c] sm:$0xf]
    %s654 = scalar_lea.vmem %s2, 6
    %v655 = vld [vmem:[%s654] sm:$0x1]
    %v657 = vlaneseq
    %v658 = vshrl.u32 %v657, 7
    %v659 = vsub.s32 0, %v658
    %v660 = vrot.slane %v655, %v659
    %v678 = vunpack.c.l.b16 %v638
    %v679 = vunpack.c.l.b16 %v639
    %v680 = vunpack.c.l.b16 %v640
    %v681 = vunpack.c.l.b16 %v641
    %v682 = vunpack.c.l.b16 %v642
    %v683 = vunpack.c.l.b16 %v643
    %v684 = vunpack.c.l.b16 %v644
    %v685 = vunpack.c.l.b16 %v645
    %v686 = vunpack.c.l.b16 %v646
    %v687 = vunpack.c.l.b16 %v647
    %v688 = vunpack.c.l.b16 %v648
    %v689 = vunpack.c.l.b16 %v649
    %v690 = vunpack.c.l.b16 %v650
    %v691 = vunpack.c.l.b16 %v651
    %v692 = vunpack.c.l.b16 %v652
    %v693 = vunpack.c.l.b16 %v653
    %v694 = vpack.c.b16 %v679, %v678
    %v695 = vpack.c.b16 %v681, %v680
    %v696 = vpack.c.b16 %v683, %v682
    %v697 = vpack.c.b16 %v685, %v684
    %v698 = vpack.c.b16 %v687, %v686
    %v699 = vpack.c.b16 %v689, %v688
    %v700 = vpack.c.b16 %v691, %v690
    %v701 = vpack.c.b16 %v693, %v692
    %710 = vmatprep.subr.bf16.mxu0 0
    %711 = vmatpush1.bf16.msra.mxu0 %v694
    %712 = vmatprep.subr.bf16.mxu0 0
    %713 = vmatpush1.bf16.msra.mxu0 %v695
    %714 = vmatprep.subr.bf16.mxu0 0
    %715 = vmatpush1.bf16.msra.mxu0 %v696
    %716 = vmatprep.subr.bf16.mxu0 0
    %717 = vmatpush1.bf16.msra.mxu0 %v697
    %718 = vmatprep.subr.bf16.mxu0 0
    %719 = vmatpush1.bf16.msra.mxu0 %v698
    %720 = vmatprep.subr.bf16.mxu0 0
    %721 = vmatpush1.bf16.msra.mxu0 %v699
    %722 = vmatprep.subr.bf16.mxu0 0
    %723 = vmatpush1.bf16.msra.mxu0 %v700
    %724 = vmatprep.subr.bf16.mxu0 0
    %725 = vmatpush1.bf16.msra.mxu0 %v701
    %726 = vmatprep.subr.bf16.mxu0 0
    %727 = vmatpush1.bf16.msra.mxu0 0
    %728 = vmatprep.subr.bf16.mxu0 0
    %729 = vmatpush1.bf16.msra.mxu0 0
    %730 = vmatprep.subr.bf16.mxu0 0
    %731 = vmatpush1.bf16.msra.mxu0 0
    %732 = vmatprep.subr.bf16.mxu0 0
    %733 = vmatpush1.bf16.msra.mxu0 0
    %734 = vmatprep.subr.bf16.mxu0 0
    %735 = vmatpush1.bf16.msra.mxu0 0
    %736 = vmatprep.subr.bf16.mxu0 0
    %737 = vmatpush1.bf16.msra.mxu0 0
    %738 = vmatprep.subr.bf16.mxu0 0
    %739 = vmatpush1.bf16.msra.mxu0 0
    %740 = vmatprep.subr.bf16.mxu0 0
    %741 = vmatpush1.bf16.msra.mxu0 0
    %742 = vmatprep.mubr.bf16.mxu0 0
    %743 = vmatmul.mubr.bf16.gmra.mrb[0].mxu0 %v636
    %v744 = vpop.f32.mrb[0].mxu0
    %v745 = vadd.f32 %v660, %v744
    %v746 = vpop.f32.mrb[0].mxu0
    %v747 = vpop.f32.mrb[0].mxu0
    %v748 = vpop.f32.mrb[0].mxu0
    %749 = vdwg.mxu0
    %v750 = vmax.f32 %v745, 0.0
    %v751 = vpack.c.bf16 %v750, %v750
    %s752 = scalar_lea.vmem [#allocation2], 448
    %v753 = vld [vmem:[%s752] sm:$0xf]
    %v754 = vld [vmem:[%s752 + $0x4] sm:$0xf]
    %v755 = vld [vmem:[%s752 + $0x8] sm:$0xf]
    %v756 = vld [vmem:[%s752 + $0xc] sm:$0xf]
    %v757 = vld [vmem:[%s752 + $0x10] sm:$0xf]
    %v758 = vld [vmem:[%s752 + $0x14] sm:$0xf]
    %v759 = vld [vmem:[%s752 + $0x18] sm:$0xf]
    %v760 = vld [vmem:[%s752 + $0x1c] sm:$0xf]
    %v761 = vld [vmem:[%s752 + $0x20] sm:$0xf]
    %v762 = vld [vmem:[%s752 + $0x24] sm:$0xf]
    %v763 = vld [vmem:[%s752 + $0x28] sm:$0xf]
    %v764 = vld [vmem:[%s752 + $0x2c] sm:$0xf]
    %v765 = vld [vmem:[%s752 + $0x30] sm:$0xf]
    %v766 = vld [vmem:[%s752 + $0x34] sm:$0xf]
    %v767 = vld [vmem:[%s752 + $0x38] sm:$0xf]
    %v768 = vld [vmem:[%s752 + $0x3c] sm:$0xf]
    %s769 = scalar_lea.vmem %s2, 7
    %v770 = vld [vmem:[%s769] sm:$0x1]
    %v772 = vlaneseq
    %v773 = vshrl.u32 %v772, 7
    %v774 = vsub.s32 0, %v773
    %v775 = vrot.slane %v770, %v774
    %v793 = vunpack.c.l.b16 %v753
    %v794 = vunpack.c.l.b16 %v754
    %v795 = vunpack.c.l.b16 %v755
    %v796 = vunpack.c.l.b16 %v756
    %v797 = vunpack.c.l.b16 %v757
    %v798 = vunpack.c.l.b16 %v758
    %v799 = vunpack.c.l.b16 %v759
    %v800 = vunpack.c.l.b16 %v760
    %v801 = vunpack.c.l.b16 %v761
    %v802 = vunpack.c.l.b16 %v762
    %v803 = vunpack.c.l.b16 %v763
    %v804 = vunpack.c.l.b16 %v764
    %v805 = vunpack.c.l.b16 %v765
    %v806 = vunpack.c.l.b16 %v766
    %v807 = vunpack.c.l.b16 %v767
    %v808 = vunpack.c.l.b16 %v768
    %v809 = vpack.c.b16 %v794, %v793
    %v810 = vpack.c.b16 %v796, %v795
    %v811 = vpack.c.b16 %v798, %v797
    %v812 = vpack.c.b16 %v800, %v799
    %v813 = vpack.c.b16 %v802, %v801
    %v814 = vpack.c.b16 %v804, %v803
    %v815 = vpack.c.b16 %v806, %v805
    %v816 = vpack.c.b16 %v808, %v807
    %825 = vmatprep.subr.bf16.mxu0 0
    %826 = vmatpush1.bf16.msra.mxu0 %v809
    %827 = vmatprep.subr.bf16.mxu0 0
    %828 = vmatpush1.bf16.msra.mxu0 %v810
    %829 = vmatprep.subr.bf16.mxu0 0
    %830 = vmatpush1.bf16.msra.mxu0 %v811
    %831 = vmatprep.subr.bf16.mxu0 0
    %832 = vmatpush1.bf16.msra.mxu0 %v812
    %833 = vmatprep.subr.bf16.mxu0 0
    %834 = vmatpush1.bf16.msra.mxu0 %v813
    %835 = vmatprep.subr.bf16.mxu0 0
    %836 = vmatpush1.bf16.msra.mxu0 %v814
    %837 = vmatprep.subr.bf16.mxu0 0
    %838 = vmatpush1.bf16.msra.mxu0 %v815
    %839 = vmatprep.subr.bf16.mxu0 0
    %840 = vmatpush1.bf16.msra.mxu0 %v816
    %841 = vmatprep.subr.bf16.mxu0 0
    %842 = vmatpush1.bf16.msra.mxu0 0
    %843 = vmatprep.subr.bf16.mxu0 0
    %844 = vmatpush1.bf16.msra.mxu0 0
    %845 = vmatprep.subr.bf16.mxu0 0
    %846 = vmatpush1.bf16.msra.mxu0 0
    %847 = vmatprep.subr.bf16.mxu0 0
    %848 = vmatpush1.bf16.msra.mxu0 0
    %849 = vmatprep.subr.bf16.mxu0 0
    %850 = vmatpush1.bf16.msra.mxu0 0
    %851 = vmatprep.subr.bf16.mxu0 0
    %852 = vmatpush1.bf16.msra.mxu0 0
    %853 = vmatprep.subr.bf16.mxu0 0
    %854 = vmatpush1.bf16.msra.mxu0 0
    %855 = vmatprep.subr.bf16.mxu0 0
    %856 = vmatpush1.bf16.msra.mxu0 0
    %857 = vmatprep.mubr.bf16.mxu0 0
    %858 = vmatmul.mubr.bf16.gmra.mrb[0].mxu0 %v751
    %v859 = vpop.f32.mrb[0].mxu0
    %v860 = vadd.f32 %v775, %v859
    %v861 = vpop.f32.mrb[0].mxu0
    %v862 = vpop.f32.mrb[0].mxu0
    %v863 = vpop.f32.mrb[0].mxu0
    %864 = vdwg.mxu0
    %v865 = vmax.f32 %v860, 0.0
    %v866 = vpack.c.bf16 %v865, %v865
    %s867 = scalar_lea.vmem [#allocation2], 512
    %v868 = vld [vmem:[%s867] sm:$0xf]
    %v869 = vld [vmem:[%s867 + $0x4] sm:$0xf]
    %v870 = vld [vmem:[%s867 + $0x8] sm:$0xf]
    %v871 = vld [vmem:[%s867 + $0xc] sm:$0xf]
    %v872 = vld [vmem:[%s867 + $0x10] sm:$0xf]
    %v873 = vld [vmem:[%s867 + $0x14] sm:$0xf]
    %v874 = vld [vmem:[%s867 + $0x18] sm:$0xf]
    %v875 = vld [vmem:[%s867 + $0x1c] sm:$0xf]
    %v876 = vld [vmem:[%s867 + $0x20] sm:$0xf]
    %v877 = vld [vmem:[%s867 + $0x24] sm:$0xf]
    %v878 = vld [vmem:[%s867 + $0x28] sm:$0xf]
    %v879 = vld [vmem:[%s867 + $0x2c] sm:$0xf]
    %v880 = vld [vmem:[%s867 + $0x30] sm:$0xf]
    %v881 = vld [vmem:[%s867 + $0x34] sm:$0xf]
    %v882 = vld [vmem:[%s867 + $0x38] sm:$0xf]
    %v883 = vld [vmem:[%s867 + $0x3c] sm:$0xf]
    %s884 = scalar_lea.vmem %s2, 8
    %v885 = vld [vmem:[%s884] sm:$0x1]
    %v887 = vlaneseq
    %v888 = vshrl.u32 %v887, 7
    %v889 = vsub.s32 0, %v888
    %v890 = vrot.slane %v885, %v889
    %v908 = vunpack.c.l.b16 %v868
    %v909 = vunpack.c.l.b16 %v869
    %v910 = vunpack.c.l.b16 %v870
    %v911 = vunpack.c.l.b16 %v871
    %v912 = vunpack.c.l.b16 %v872
    %v913 = vunpack.c.l.b16 %v873
    %v914 = vunpack.c.l.b16 %v874
    %v915 = vunpack.c.l.b16 %v875
    %v916 = vunpack.c.l.b16 %v876
    %v917 = vunpack.c.l.b16 %v877
    %v918 = vunpack.c.l.b16 %v878
    %v919 = vunpack.c.l.b16 %v879
    %v920 = vunpack.c.l.b16 %v880
    %v921 = vunpack.c.l.b16 %v881
    %v922 = vunpack.c.l.b16 %v882
    %v923 = vunpack.c.l.b16 %v883
    %v924 = vpack.c.b16 %v909, %v908
    %v925 = vpack.c.b16 %v911, %v910
    %v926 = vpack.c.b16 %v913, %v912
    %v927 = vpack.c.b16 %v915, %v914
    %v928 = vpack.c.b16 %v917, %v916
    %v929 = vpack.c.b16 %v919, %v918
    %v930 = vpack.c.b16 %v921, %v920
    %v931 = vpack.c.b16 %v923, %v922
    %940 = vmatprep.subr.bf16.mxu0 0
    %941 = vmatpush1.bf16.msra.mxu0 %v924
    %942 = vmatprep.subr.bf16.mxu0 0
    %943 = vmatpush1.bf16.msra.mxu0 %v925
    %944 = vmatprep.subr.bf16.mxu0 0
    %945 = vmatpush1.bf16.msra.mxu0 %v926
    %946 = vmatprep.subr.bf16.mxu0 0
    %947 = vmatpush1.bf16.msra.mxu0 %v927
    %948 = vmatprep.subr.bf16.mxu0 0
    %949 = vmatpush1.bf16.msra.mxu0 %v928
    %950 = vmatprep.subr.bf16.mxu0 0
    %951 = vmatpush1.bf16.msra.mxu0 %v929
    %952 = vmatprep.subr.bf16.mxu0 0
    %953 = vmatpush1.bf16.msra.mxu0 %v930
    %954 = vmatprep.subr.bf16.mxu0 0
    %955 = vmatpush1.bf16.msra.mxu0 %v931
    %956 = vmatprep.subr.bf16.mxu0 0
    %957 = vmatpush1.bf16.msra.mxu0 0
    %958 = vmatprep.subr.bf16.mxu0 0
    %959 = vmatpush1.bf16.msra.mxu0 0
    %960 = vmatprep.subr.bf16.mxu0 0
    %961 = vmatpush1.bf16.msra.mxu0 0
    %962 = vmatprep.subr.bf16.mxu0 0
    %963 = vmatpush1.bf16.msra.mxu0 0
    %964 = vmatprep.subr.bf16.mxu0 0
    %965 = vmatpush1.bf16.msra.mxu0 0
    %966 = vmatprep.subr.bf16.mxu0 0
    %967 = vmatpush1.bf16.msra.mxu0 0
    %968 = vmatprep.subr.bf16.mxu0 0
    %969 = vmatpush1.bf16.msra.mxu0 0
    %970 = vmatprep.subr.bf16.mxu0 0
    %971 = vmatpush1.bf16.msra.mxu0 0
    %972 = vmatprep.mubr.bf16.mxu0 0
    %973 = vmatmul.mubr.bf16.gmra.mrb[0].mxu0 %v866
    %v974 = vpop.f32.mrb[0].mxu0
    %v975 = vadd.f32 %v890, %v974
    %v976 = vpop.f32.mrb[0].mxu0
    %v977 = vpop.f32.mrb[0].mxu0
    %v978 = vpop.f32.mrb[0].mxu0
    %979 = vdwg.mxu0
    %v980 = vmax.f32 %v975, 0.0
    %v981 = vpack.c.bf16 %v980, %v980
    %s982 = scalar_lea.vmem [#allocation2], 576
    %v983 = vld [vmem:[%s982] sm:$0xf]
    %v984 = vld [vmem:[%s982 + $0x4] sm:$0xf]
    %v985 = vld [vmem:[%s982 + $0x8] sm:$0xf]
    %v986 = vld [vmem:[%s982 + $0xc] sm:$0xf]
    %v987 = vld [vmem:[%s982 + $0x10] sm:$0xf]
    %v988 = vld [vmem:[%s982 + $0x14] sm:$0xf]
    %v989 = vld [vmem:[%s982 + $0x18] sm:$0xf]
    %v990 = vld [vmem:[%s982 + $0x1c] sm:$0xf]
    %v991 = vld [vmem:[%s982 + $0x20] sm:$0xf]
    %v992 = vld [vmem:[%s982 + $0x24] sm:$0xf]
    %v993 = vld [vmem:[%s982 + $0x28] sm:$0xf]
    %v994 = vld [vmem:[%s982 + $0x2c] sm:$0xf]
    %v995 = vld [vmem:[%s982 + $0x30] sm:$0xf]
    %v996 = vld [vmem:[%s982 + $0x34] sm:$0xf]
    %v997 = vld [vmem:[%s982 + $0x38] sm:$0xf]
    %v998 = vld [vmem:[%s982 + $0x3c] sm:$0xf]
    %s999 = scalar_lea.vmem %s2, 9
    %v1000 = vld [vmem:[%s999] sm:$0x1]
    %v1002 = vlaneseq
    %v1003 = vshrl.u32 %v1002, 7
    %v1004 = vsub.s32 0, %v1003
    %v1005 = vrot.slane %v1000, %v1004
    %v1023 = vunpack.c.l.b16 %v983
    %v1024 = vunpack.c.l.b16 %v984
    %v1025 = vunpack.c.l.b16 %v985
    %v1026 = vunpack.c.l.b16 %v986
    %v1027 = vunpack.c.l.b16 %v987
    %v1028 = vunpack.c.l.b16 %v988
    %v1029 = vunpack.c.l.b16 %v989
    %v1030 = vunpack.c.l.b16 %v990
    %v1031 = vunpack.c.l.b16 %v991
    %v1032 = vunpack.c.l.b16 %v992
    %v1033 = vunpack.c.l.b16 %v993
    %v1034 = vunpack.c.l.b16 %v994
    %v1035 = vunpack.c.l.b16 %v995
    %v1036 = vunpack.c.l.b16 %v996
    %v1037 = vunpack.c.l.b16 %v997
    %v1038 = vunpack.c.l.b16 %v998
    %v1039 = vpack.c.b16 %v1024, %v1023
    %v1040 = vpack.c.b16 %v1026, %v1025
    %v1041 = vpack.c.b16 %v1028, %v1027
    %v1042 = vpack.c.b16 %v1030, %v1029
    %v1043 = vpack.c.b16 %v1032, %v1031
    %v1044 = vpack.c.b16 %v1034, %v1033
    %v1045 = vpack.c.b16 %v1036, %v1035
    %v1046 = vpack.c.b16 %v1038, %v1037
    %1055 = vmatprep.subr.bf16.mxu0 0
    %1056 = vmatpush1.bf16.msra.mxu0 %v1039
    %1057 = vmatprep.subr.bf16.mxu0 0
    %1058 = vmatpush1.bf16.msra.mxu0 %v1040
    %1059 = vmatprep.subr.bf16.mxu0 0
    %1060 = vmatpush1.bf16.msra.mxu0 %v1041
    %1061 = vmatprep.subr.bf16.mxu0 0
    %1062 = vmatpush1.bf16.msra.mxu0 %v1042
    %1063 = vmatprep.subr.bf16.mxu0 0
    %1064 = vmatpush1.bf16.msra.mxu0 %v1043
    %1065 = vmatprep.subr.bf16.mxu0 0
    %1066 = vmatpush1.bf16.msra.mxu0 %v1044
    %1067 = vmatprep.subr.bf16.mxu0 0
    %1068 = vmatpush1.bf16.msra.mxu0 %v1045
    %1069 = vmatprep.subr.bf16.mxu0 0
    %1070 = vmatpush1.bf16.msra.mxu0 %v1046
    %1071 = vmatprep.subr.bf16.mxu0 0
    %1072 = vmatpush1.bf16.msra.mxu0 0
    %1073 = vmatprep.subr.bf16.mxu0 0
    %1074 = vmatpush1.bf16.msra.mxu0 0
    %1075 = vmatprep.subr.bf16.mxu0 0
    %1076 = vmatpush1.bf16.msra.mxu0 0
    %1077 = vmatprep.subr.bf16.mxu0 0
    %1078 = vmatpush1.bf16.msra.mxu0 0
    %1079 = vmatprep.subr.bf16.mxu0 0
    %1080 = vmatpush1.bf16.msra.mxu0 0
    %1081 = vmatprep.subr.bf16.mxu0 0
    %1082 = vmatpush1.bf16.msra.mxu0 0
    %1083 = vmatprep.subr.bf16.mxu0 0
    %1084 = vmatpush1.bf16.msra.mxu0 0
    %1085 = vmatprep.subr.bf16.mxu0 0
    %1086 = vmatpush1.bf16.msra.mxu0 0
    %1087 = vmatprep.mubr.bf16.mxu0 0
    %1088 = vmatmul.mubr.bf16.gmra.mrb[0].mxu0 %v981
    %v1089 = vpop.f32.mrb[0].mxu0
    %v1090 = vadd.f32 %v1005, %v1089
    %v1091 = vpop.f32.mrb[0].mxu0
    %v1092 = vpop.f32.mrb[0].mxu0
    %v1093 = vpop.f32.mrb[0].mxu0
    %1094 = vdwg.mxu0
    %vm1095 = vcmask 15360
    %1096 = vst.msk [vmem:[%s3] sm:$0xff] %vm1095, %v1090
    // Predicated region
    $region18: #{distance2_forward.1} parent=1 // pred_check
      _
    $region19: #{distance2_forward.1} parent=1 // pred_check_branch
      %1098 = sbr.rel (0) target = $region21
    $region20: #{distance2_forward.1} parent=1 // pred_region
      _
    $region21: #{distance2_forward.1} parent=1 // pred_fallthru
      _
    // Predicated region
    $region22: #{distance2_forward.1} parent=1 // pred_check
      _
    $region23: #{distance2_forward.1} parent=1 // pred_check_branch
      %1100 = sbr.rel (0) target = $region25
    $region24: #{distance2_forward.1} parent=1 // pred_region
      _
    $region25: #{distance2_forward.1} parent=1 // pred_fallthru
      _
    %1101 = vsyncpa [#allocation3], 1

</llo_original>
